<compile_context>
chip_gen: v6e
topology: v6e:2x2x1
jax: 0.10.0
libtpu: 0.0.40
codegen_flags: <defaults>
</compile_context>

<pallas_src>
import jax
import jax.numpy as jnp
from jax.experimental import pallas as pl
from jax.experimental.pallas import tpu as pltpu


def _round_up(x, m):
    return ((x + m - 1) // m) * m


def _disc_kernel(s_ref, a_ref, w1s_ref, w1a_ref, b1_ref, w2_ref, b2_ref,
                 w3_ref, b3_ref, o_ref):
    """One batch tile: [TB, s_dim] + [TB, N_action] -> sigmoid probs [1, TB]."""
    cdt = w1s_ref.dtype  # compute dtype (f32 or bf16); casts below are VPU filler.

    # fc1 -- torch.cat expressed as a split matmul, f32 accumulation on MXU.
    h1 = jnp.dot(s_ref[...].astype(cdt), w1s_ref[...],
                 preferred_element_type=jnp.float32)
    h1 += jnp.dot(a_ref[...].astype(cdt), w1a_ref[...],
                  preferred_element_type=jnp.float32)
    h1 = jnp.maximum(h1 + b1_ref[...], 0.0)                       # [TB, 128] f32

    # fc2
    h2 = jnp.dot(h1.astype(w2_ref.dtype), w2_ref[...],
                 preferred_element_type=jnp.float32)
    h2 = jnp.maximum(h2 + b2_ref[...], 0.0)                       # [TB, 64] f32

    # fc3: contract the fc3 weight row (1, 64) against h2 (TB, 64) on their
    # feature axes -> (1, TB): logits land with batch on the lane axis, so the
    # output store is a dense (unmasked) vst instead of a [TB, 1] column.
    logit = jax.lax.dot_general(
        w3_ref[...], h2.astype(w3_ref.dtype),
        dimension_numbers=(((1,), (1,)), ((), ())),
        preferred_element_type=jnp.float32) + b3_ref[...]         # [1, TB] f32

    o_ref[...] = jax.nn.sigmoid(logit).astype(o_ref.dtype)


def discriminator_forward(state, action, params, *, block_b=8192,
                          compute_dtype=None):
    """state: [B, s_dim], action: [B, N_action] -> [B, 1] in (0, 1).

    params = (w1 [s_dim+N_action, 128], b1 [1, 128], w2 [128, 64], b2 [1, 64],
              w3 [1, 64]  (PyTorch [out, in] layout), b3 [1, 1]).
    """
    w1, b1, w2, b2, w3, b3 = params
    B, s_dim = state.shape
    n_action = action.shape[1]

    # Split fc1's weight so the concat happens inside the kernel.
    w1_s, w1_a = w1[:s_dim], w1[s_dim:]

    if compute_dtype is not None:
        # Cast only the (tiny) weights once. Do NOT cast state/action here --
        # a wrapper-side .astype is a full extra HBM pass that cancels the
        # bandwidth win. Callers wanting bf16 input traffic pass bf16 arrays.
        w1_s = w1_s.astype(compute_dtype)
        w1_a = w1_a.astype(compute_dtype)
        w2 = w2.astype(compute_dtype)
        w3 = w3.astype(compute_dtype)

    # --- batch tiling ------------------------------------------------------
    # Pad inputs only to the next multiple of 128 (<= 127 rows), never to tb.
    b_in = _round_up(B, 128)
    if b_in != B:
        state = jnp.pad(state, ((0, b_in - B), (0, 0)))
        action = jnp.pad(action, ((0, b_in - B), (0, 0)))

    block_b = max(128, _round_up(block_b, 128))
    # Keep >= 2 grid steps when the batch allows it, so the "parallel" batch
    # axis can shard across both v7x TensorCores (no effect on v5e/v6e).
    tb = min(block_b, max(128, _round_up(pl.cdiv(b_in, 2), 128)))
    # Conservative per-step VMEM budget (12 MiB: fits v5e's 16 MiB scoped
    # default and v7x's 32 MiB), guarding against oversized block_b.
    per_row_bytes = 2 * (s_dim + n_action) * 4 + (128 + 64) * 4 + 16
    tb_vmem = max(128, ((12 << 20) // per_row_bytes) // 128 * 128)
    tb = min(tb, tb_vmem)

    grid = (pl.cdiv(b_in, tb),)
    b_out = grid[0] * tb            # output padded to whole blocks: dense vst
    # (Any ragged last input block only produces garbage in rows >= B; every
    #  op in the kernel is row-confined, and those rows are sliced away.)

    def row_spec(feat):             # batch-tiled activations
        return pl.BlockSpec((tb, feat), lambda i: (i, 0))

    def const_spec(shape):          # VMEM-resident weights / biases
        return pl.BlockSpec(shape, lambda i: (0, 0))

    flops = 2 * b_out * (128 * (s_dim + n_action) + 128 * 64 + 64)
    bytes_accessed = (
        state.size * state.dtype.itemsize
        + action.size * action.dtype.itemsize
        + sum(int(a.size) * a.dtype.itemsize
              for a in (w1_s, w1_a, b1, w2, b2, w3, b3))
        + b_out * 4)

    out = pl.pallas_call(
        _disc_kernel,
        out_shape=jax.ShapeDtypeStruct((1, b_out), jnp.float32),
        grid=grid,
        in_specs=[
            row_spec(s_dim),                    # state   [TB, s_dim]
            row_spec(n_action),                 # action  [TB, N_action]
            const_spec((s_dim, 128)),           # w1_s
            const_spec((n_action, 128)),        # w1_a
            const_spec((1, 128)),               # b1
            const_spec((128, 64)),              # w2
            const_spec((1, 64)),                # b2
            const_spec((1, 64)),                # w3 (PyTorch [out, in] layout)
            const_spec((1, 1)),                 # b3
        ],
        out_specs=pl.BlockSpec((1, tb), lambda i: (0, i)),
        compiler_params=pltpu.CompilerParams(
            dimension_semantics=("parallel",)),
        cost_estimate=pl.CostEstimate(flops=flops, transcendentals=b_out,
                                      bytes_accessed=bytes_accessed),
    )(state, action, w1_s, w1_a, b1, w2, b2, w3, b3)

    # (1, b_out) lane-dense slab -> [B, 1]
    return out[0, :B, None]


def init_params(key, s_dim, n_action):
    """PyTorch nn.Linear default init: U(-1/sqrt(fan_in), +1/sqrt(fan_in)).

    w1, w2 are stored transposed vs. PyTorch ([in, out]) so the kernel computes
    x @ W; w3 is kept in PyTorch [out=1, in=64] layout so the kernel can emit
    lane-dense logits directly.
    """
    params = []
    for fan_in, fan_out, transposed in ((s_dim + n_action, 128, True),
                                        (128, 64, True),
                                        (64, 1, False)):
        key, kw, kb = jax.random.split(key, 3)
        bound = 1.0 / float(fan_in) ** 0.5
        shape = (fan_in, fan_out) if transposed else (fan_out, fan_in)
        w = jax.random.uniform(kw, shape, jnp.float32, -bound, bound)
        b = jax.random.uniform(kb, (1, fan_out), jnp.float32, -bound, bound)
        params += [w, b]
    return tuple(params)


def _reference(state, action, params):
    w1, b1, w2, b2, w3, b3 = params
    x = jnp.concatenate([state, action], axis=1)
    x = jax.nn.relu(x @ w1 + b1)
    x = jax.nn.relu(x @ w2 + b2)
    return jax.nn.sigmoid(x @ w3.T + b3)


if __name__ == "__main__":
    s_dim, n_action = 20, 4
    key = jax.random.PRNGKey(0)
    k_s, k_a, k_p, k_s2, k_a2 = jax.random.split(key, 5)
    params = init_params(k_p, s_dim, n_action)

    # Small demo batch (single grid step, padded 8 -> 128 rows internally).
    state = jax.random.normal(k_s, (8, s_dim), jnp.float32)
    action = jax.random.normal(k_a, (8, n_action), jnp.float32)
    out = jax.block_until_ready(discriminator_forward(state, action, params))
    ref = _reference(state, action, params)
    assert out.shape == (8, 1)
    assert jnp.allclose(out, ref, atol=1e-4, rtol=1e-4)

    # Non-tile-aligned batch; tb auto-caps to 128 -> 2 grid steps (exercises
    # tiling, the 128-only pad, and the v7x two-core split path).
    state2 = jax.random.normal(k_s2, (200, s_dim), jnp.float32)
    action2 = jax.random.normal(k_a2, (200, n_action), jnp.float32)
    out2 = jax.block_until_ready(discriminator_forward(state2, action2, params))
    ref2 = _reference(state2, action2, params)
    assert out2.shape == (200, 1)
    assert jnp.allclose(out2, ref2, atol=1e-4, rtol=1e-4)

    # bf16 weight path (inputs stay f32 in HBM, in-kernel cast, f32 MXU acc).
    out_bf16 = jax.block_until_ready(
        discriminator_forward(state2, action2, params,
                              compute_dtype=jnp.bfloat16))
    assert jnp.allclose(out_bf16, ref2, atol=5e-2, rtol=5e-2)

    print("KERNEL_OK")
</pallas_src>

<mosaic_0001>
module attributes {stable_mosaic.version = 11 : i64} {
  func.func @_disc_kernel(%arg0: i32, %arg1: memref<128x20xf32, #tpu.memory_space<vmem>>, %arg2: memref<128x4xf32, #tpu.memory_space<vmem>>, %arg3: memref<20x128xf32, #tpu.memory_space<vmem>>, %arg4: memref<4x128xf32, #tpu.memory_space<vmem>>, %arg5: memref<1x128xf32, #tpu.memory_space<vmem>>, %arg6: memref<128x64xf32, #tpu.memory_space<vmem>>, %arg7: memref<1x64xf32, #tpu.memory_space<vmem>>, %arg8: memref<1x64xf32, #tpu.memory_space<vmem>>, %arg9: memref<1x1xf32, #tpu.memory_space<vmem>>, %arg10: memref<1x128xf32, #tpu.memory_space<vmem>>) attributes {dimension_semantics = [#tpu.dimension_semantics<parallel>], iteration_bounds = array<i64: 1>, scalar_prefetch = 0 : i64, scratch_operands = 0 : i64, tpu.core_type = #tpu.core_type<tc>, window_params = [{transform_indices = @transform_0, window_bounds = array<i64: 128, 20>}, {transform_indices = @transform_1, window_bounds = array<i64: 128, 4>}, {pipeline_mode = #tpu.pipeline_mode<synchronous>, transform_indices = @transform_2, window_bounds = array<i64: 20, 128>}, {pipeline_mode = #tpu.pipeline_mode<synchronous>, transform_indices = @transform_3, window_bounds = array<i64: 4, 128>}, {pipeline_mode = #tpu.pipeline_mode<synchronous>, transform_indices = @transform_4, window_bounds = array<i64: 1, 128>}, {pipeline_mode = #tpu.pipeline_mode<synchronous>, transform_indices = @transform_5, window_bounds = array<i64: 128, 64>}, {pipeline_mode = #tpu.pipeline_mode<synchronous>, transform_indices = @transform_6, window_bounds = array<i64: 1, 64>}, {pipeline_mode = #tpu.pipeline_mode<synchronous>, transform_indices = @transform_7, window_bounds = array<i64: 1, 64>}, {pipeline_mode = #tpu.pipeline_mode<synchronous>, transform_indices = @transform_8, window_bounds = array<i64: 1, 1>}, {transform_indices = @transform_9, window_bounds = array<i64: 1, 128>}]} {
    %c0 = arith.constant 0 : index
    %c0_0 = arith.constant 0 : index
    %0 = vector.load %arg1[%c0, %c0_0] : memref<128x20xf32, #tpu.memory_space<vmem>>, vector<128x20xf32>
    %c0_1 = arith.constant 0 : index
    %c0_2 = arith.constant 0 : index
    %1 = vector.load %arg3[%c0_1, %c0_2] : memref<20x128xf32, #tpu.memory_space<vmem>>, vector<20x128xf32>
    %cst = arith.constant dense<0.000000e+00> : vector<128x128xf32>
    %2 = tpu.matmul %0, %1, %cst {dimension_numbers = #tpu.dot_dimension_numbers<[1], [0], [0], [1], [0, 0, 1, 1], [], []>} : vector<128x20xf32>, vector<20x128xf32>, vector<128x128xf32> -> vector<128x128xf32>
    %c0_3 = arith.constant 0 : index
    %c0_4 = arith.constant 0 : index
    %3 = vector.load %arg2[%c0_3, %c0_4] : memref<128x4xf32, #tpu.memory_space<vmem>>, vector<128x4xf32>
    %c0_5 = arith.constant 0 : index
    %c0_6 = arith.constant 0 : index
    %4 = vector.load %arg4[%c0_5, %c0_6] : memref<4x128xf32, #tpu.memory_space<vmem>>, vector<4x128xf32>
    %cst_7 = arith.constant dense<0.000000e+00> : vector<128x128xf32>
    %5 = tpu.matmul %3, %4, %cst_7 {dimension_numbers = #tpu.dot_dimension_numbers<[1], [0], [0], [1], [0, 0, 1, 1], [], []>} : vector<128x4xf32>, vector<4x128xf32>, vector<128x128xf32> -> vector<128x128xf32>
    %6 = arith.addf %2, %5 : vector<128x128xf32>
    %c0_8 = arith.constant 0 : index
    %c0_9 = arith.constant 0 : index
    %7 = vector.load %arg5[%c0_8, %c0_9] : memref<1x128xf32, #tpu.memory_space<vmem>>, vector<1x128xf32>
    %8 = vector.broadcast %7 : vector<1x128xf32> to vector<128x128xf32>
    %9 = arith.addf %6, %8 : vector<128x128xf32>
    %cst_10 = arith.constant 0.000000e+00 : f32
    %10 = vector.broadcast %cst_10 : f32 to vector<128x128xf32>
    %11 = arith.maximumf %9, %10 : vector<128x128xf32>
    %c0_11 = arith.constant 0 : index
    %c0_12 = arith.constant 0 : index
    %12 = vector.load %arg6[%c0_11, %c0_12] : memref<128x64xf32, #tpu.memory_space<vmem>>, vector<128x64xf32>
    %cst_13 = arith.constant dense<0.000000e+00> : vector<128x64xf32>
    %13 = tpu.matmul %11, %12, %cst_13 {dimension_numbers = #tpu.dot_dimension_numbers<[1], [0], [0], [1], [0, 0, 1, 1], [], []>} : vector<128x128xf32>, vector<128x64xf32>, vector<128x64xf32> -> vector<128x64xf32>
    %c0_14 = arith.constant 0 : index
    %c0_15 = arith.constant 0 : index
    %14 = vector.load %arg7[%c0_14, %c0_15] : memref<1x64xf32, #tpu.memory_space<vmem>>, vector<1x64xf32>
    %15 = vector.broadcast %14 : vector<1x64xf32> to vector<128x64xf32>
    %16 = arith.addf %13, %15 : vector<128x64xf32>
    %cst_16 = arith.constant 0.000000e+00 : f32
    %17 = vector.broadcast %cst_16 : f32 to vector<128x64xf32>
    %18 = arith.maximumf %16, %17 : vector<128x64xf32>
    %c0_17 = arith.constant 0 : index
    %c0_18 = arith.constant 0 : index
    %19 = vector.load %arg8[%c0_17, %c0_18] : memref<1x64xf32, #tpu.memory_space<vmem>>, vector<1x64xf32>
    %cst_19 = arith.constant dense<0.000000e+00> : vector<1x128xf32>
    %20 = tpu.matmul %19, %18, %cst_19 {dimension_numbers = #tpu.dot_dimension_numbers<[1], [1], [0], [0], [0, 0, 1, 0], [], []>} : vector<1x64xf32>, vector<128x64xf32>, vector<1x128xf32> -> vector<1x128xf32>
    %c0_20 = arith.constant 0 : index
    %c0_21 = arith.constant 0 : index
    %21 = vector.load %arg9[%c0_20, %c0_21] : memref<1x1xf32, #tpu.memory_space<vmem>>, vector<1x1xf32>
    %22 = vector.broadcast %21 : vector<1x1xf32> to vector<1x128xf32>
    %23 = arith.addf %20, %22 : vector<1x128xf32>
    %24 = arith.negf %23 : vector<1x128xf32>
    %25 = math.exp %24 : vector<1x128xf32>
    %cst_22 = arith.constant 1.000000e+00 : f32
    %26 = vector.broadcast %cst_22 : f32 to vector<1x128xf32>
    %27 = arith.addf %26, %25 : vector<1x128xf32>
    %28 = arith.divf %26, %27 : vector<1x128xf32>
    %c0_23 = arith.constant 0 : index
    %c0_24 = arith.constant 0 : index
    %29 = vector.load %arg10[%c0_23, %c0_24] : memref<1x128xf32, #tpu.memory_space<vmem>>, vector<1x128xf32>
    tpu.vector_store %arg10[%c0_23, %c0_24], %28 {strides = array<i32>} : memref<1x128xf32, #tpu.memory_space<vmem>>, vector<1x128xf32>,
    return
  }
  func.func @transform_0(%arg0: i32) -> (i32, i32) {
    %c0_i32 = arith.constant 0 : i32
    %c0_i32_0 = arith.constant 0 : i32
    return %arg0, %c0_i32 : i32, i32
  }
  func.func @transform_1(%arg0: i32) -> (i32, i32) {
    %c0_i32 = arith.constant 0 : i32
    %c0_i32_0 = arith.constant 0 : i32
    return %arg0, %c0_i32 : i32, i32
  }
  func.func @transform_2(%arg0: i32) -> (i32, i32) {
    %c0_i32 = arith.constant 0 : i32
    %c0_i32_0 = arith.constant 0 : i32
    %c0_i32_1 = arith.constant 0 : i32
    return %c0_i32, %c0_i32_0 : i32, i32
  }
  func.func @transform_3(%arg0: i32) -> (i32, i32) {
    %c0_i32 = arith.constant 0 : i32
    %c0_i32_0 = arith.constant 0 : i32
    %c0_i32_1 = arith.constant 0 : i32
    return %c0_i32, %c0_i32_0 : i32, i32
  }
  func.func @transform_4(%arg0: i32) -> (i32, i32) {
    %c0_i32 = arith.constant 0 : i32
    %c0_i32_0 = arith.constant 0 : i32
    %c0_i32_1 = arith.constant 0 : i32
    return %c0_i32, %c0_i32_0 : i32, i32
  }
  func.func @transform_5(%arg0: i32) -> (i32, i32) {
    %c0_i32 = arith.constant 0 : i32
    %c0_i32_0 = arith.constant 0 : i32
    %c0_i32_1 = arith.constant 0 : i32
    return %c0_i32, %c0_i32_0 : i32, i32
  }
  func.func @transform_6(%arg0: i32) -> (i32, i32) {
    %c0_i32 = arith.constant 0 : i32
    %c0_i32_0 = arith.constant 0 : i32
    %c0_i32_1 = arith.constant 0 : i32
    return %c0_i32, %c0_i32_0 : i32, i32
  }
  func.func @transform_7(%arg0: i32) -> (i32, i32) {
    %c0_i32 = arith.constant 0 : i32
    %c0_i32_0 = arith.constant 0 : i32
    %c0_i32_1 = arith.constant 0 : i32
    return %c0_i32, %c0_i32_0 : i32, i32
  }
  func.func @transform_8(%arg0: i32) -> (i32, i32) {
    %c0_i32 = arith.constant 0 : i32
    %c0_i32_0 = arith.constant 0 : i32
    %c0_i32_1 = arith.constant 0 : i32
    return %c0_i32, %c0_i32_0 : i32, i32
  }
  func.func @transform_9(%arg0: i32) -> (i32, i32) {
    %c0_i32 = arith.constant 0 : i32
    %c0_i32_0 = arith.constant 0 : i32
    return %c0_i32, %arg0 : i32, i32
  }
}

</mosaic_0001>

<llo_original>
// kernel: tpu_custom_call.1
$region0: #{tpu_custom_call.1}
  #allocation0 [shape = 'u32[]', space=smem, size = 0x4, offset = 0x4, fixed_abs, tag = 'smem constant byte address 0x4 - core index']
  #allocation1 [shape = 'u32[144,128]{1,0:T(1,128)}', space=vmem, size = 0x12000, scoped, tag = 'internal scratch']
  #allocation2 [shape = 'f32[1,1]{1,0:T(1,128)S(1)}', space=vmem, size = 0x200, scoped, tag = 'scoped memory for tpu_custom_call.1']
  %s0 = inlined_call_operand.vmem [shape: f32[128,20], index: 0, kind: input, shape index: {}]
  %s1 = inlined_call_operand.vmem [shape: f32[128,4], index: 1, kind: input, shape index: {}]
  %s2 = inlined_call_operand.vmem [shape: f32[20,128], index: 2, kind: input, shape index: {}]
  %s3 = inlined_call_operand.vmem [shape: f32[4,128], index: 3, kind: input, shape index: {}]
  %s4 = inlined_call_operand.vmem [shape: f32[1,128], index: 4, kind: input, shape index: {}]
  %s5 = inlined_call_operand.vmem [shape: f32[128,64], index: 5, kind: input, shape index: {}]
  %s6 = inlined_call_operand.vmem [shape: f32[1,64], index: 6, kind: input, shape index: {}]
  %s7 = inlined_call_operand.vmem [shape: f32[1,64], index: 7, kind: input, shape index: {}]
  %s8 = inlined_call_operand.<no memory space> [shape: f32[1,1], index: 8, kind: input, shape index: {}]
  %s9 = inlined_call_operand.hbm [shape: f32[1,128], index: 9, kind: output, shape index: {}]
  %s10 = sld [smem:[#allocation0]]
  $region46: #{tpu_custom_call.1} parent=0
    _
  %s12 = ssub.s32 1, %s10
  %s13 = scalar_select 0, %s12, %s10
  %v14 = vstv %s8
  %15 = vst [vmem:[#allocation2] sm:$0x1] %v14
  $region1: #{tpu_custom_call.1} parent=0
    #allocation3 [shape = 'u8[512]{0}', space=vmem, size = 0x400, scoped, tag = 'output window, operand 0, single buffered']
    #allocation4 [shape = 's32[1]{0}', space=sflag, size = 0x4, scoped, tag = 'scoped memory for tpu_custom_call.1']
    %16 = vsyncpa [#allocation4], 0
    // Predicated region
    $region2: #{tpu_custom_call.1} parent=1 // pred_check
      _
    $region3: #{tpu_custom_call.1} parent=1 // pred_check_branch
      %18 = sbr.rel (0) target = $region5
    $region4: #{tpu_custom_call.1} parent=1 // pred_region
      _
    $region5: #{tpu_custom_call.1} parent=1 // pred_fallthru
      _
    // Predicated region
    $region6: #{tpu_custom_call.1} parent=1 // pred_check
      _
    $region7: #{tpu_custom_call.1} parent=1 // pred_check_branch
      %20 = sbr.rel (0) target = $region9
    $region8: #{tpu_custom_call.1} parent=1 // pred_region
      _
    $region9: #{tpu_custom_call.1} parent=1 // pred_fallthru
      _
    // Predicated region
    $region10: #{tpu_custom_call.1} parent=1 // pred_check
      _
    $region11: #{tpu_custom_call.1} parent=1 // pred_check_branch
      %22 = sbr.rel (0) target = $region13
    $region12: #{tpu_custom_call.1} parent=1 // pred_region
      _
    $region13: #{tpu_custom_call.1} parent=1 // pred_fallthru
      _
    // Predicated region
    $region14: #{tpu_custom_call.1} parent=1 // pred_check
      _
    $region15: #{tpu_custom_call.1} parent=1 // pred_check_branch
      %24 = sbr.rel (0) target = $region17
    $region16: #{tpu_custom_call.1} parent=1 // pred_region
      _
    $region17: #{tpu_custom_call.1} parent=1 // pred_fallthru
      _
    // Predicated region
    $region18: #{tpu_custom_call.1} parent=1 // pred_check
      _
    $region19: #{tpu_custom_call.1} parent=1 // pred_check_branch
      %26 = sbr.rel (0) target = $region21
    $region20: #{tpu_custom_call.1} parent=1 // pred_region
      _
    $region21: #{tpu_custom_call.1} parent=1 // pred_fallthru
      _
    // Predicated region
    $region22: #{tpu_custom_call.1} parent=1 // pred_check
      _
    $region23: #{tpu_custom_call.1} parent=1 // pred_check_branch
      %28 = sbr.rel (0) target = $region25
    $region24: #{tpu_custom_call.1} parent=1 // pred_region
      _
    $region25: #{tpu_custom_call.1} parent=1 // pred_fallthru
      _
    // Predicated region
    $region26: #{tpu_custom_call.1} parent=1 // pred_check
      _
    $region27: #{tpu_custom_call.1} parent=1 // pred_check_branch
      %30 = sbr.rel (0) target = $region29
    $region28: #{tpu_custom_call.1} parent=1 // pred_region
      _
    $region29: #{tpu_custom_call.1} parent=1 // pred_fallthru
      _
    // Predicated region
    $region30: #{tpu_custom_call.1} parent=1 // pred_check
      _
    $region31: #{tpu_custom_call.1} parent=1 // pred_check_branch
      %32 = sbr.rel (0) target = $region33
    $region32: #{tpu_custom_call.1} parent=1 // pred_region
      _
    $region33: #{tpu_custom_call.1} parent=1 // pred_fallthru
      _
    // Predicated region
    $region34: #{tpu_custom_call.1} parent=1 // pred_check
      _
    $region35: #{tpu_custom_call.1} parent=1 // pred_check_branch
      %34 = sbr.rel (0) target = $region37
    $region36: #{tpu_custom_call.1} parent=1 // pred_region
      _
    $region37: #{tpu_custom_call.1} parent=1 // pred_fallthru
      _
    %v35 = vld [vmem:[%s0] sm:$0xff]
    %v36 = vld [vmem:[%s0 + $0x8] sm:$0xff]
    %v37 = vld [vmem:[%s0 + $0x10] sm:$0xff]
    %v38 = vld [vmem:[%s0 + $0x18] sm:$0xff]
    %v39 = vld [vmem:[%s0 + $0x20] sm:$0xff]
    %v40 = vld [vmem:[%s0 + $0x28] sm:$0xff]
    %v41 = vld [vmem:[%s0 + $0x30] sm:$0xff]
    %v42 = vld [vmem:[%s0 + $0x38] sm:$0xff]
    %v43 = vld [vmem:[%s0 + $0x40] sm:$0xff]
    %v44 = vld [vmem:[%s0 + $0x48] sm:$0xff]
    %v45 = vld [vmem:[%s0 + $0x50] sm:$0xff]
    %v46 = vld [vmem:[%s0 + $0x58] sm:$0xff]
    %v47 = vld [vmem:[%s0 + $0x60] sm:$0xff]
    %v48 = vld [vmem:[%s0 + $0x68] sm:$0xff]
    %v49 = vld [vmem:[%s0 + $0x70] sm:$0xff]
    %v50 = vld [vmem:[%s0 + $0x78] sm:$0xff]
    %v51 = vld [vmem:[%s2] sm:$0xff]
    %v52 = vld [vmem:[%s2 + $0x8] sm:$0xff]
    %v53 = vld [vmem:[%s2 + $0x10] sm:$0xf]
    %v54 = vld [vmem:[%s1] sm:$0xff]
    %v55 = vld [vmem:[%s1 + $0x8] sm:$0xff]
    %v56 = vld [vmem:[%s1 + $0x10] sm:$0xff]
    %v57 = vld [vmem:[%s1 + $0x18] sm:$0xff]
    %v58 = vld [vmem:[%s1 + $0x20] sm:$0xff]
    %v59 = vld [vmem:[%s1 + $0x28] sm:$0xff]
    %v60 = vld [vmem:[%s1 + $0x30] sm:$0xff]
    %v61 = vld [vmem:[%s1 + $0x38] sm:$0xff]
    %v62 = vld [vmem:[%s1 + $0x40] sm:$0xff]
    %v63 = vld [vmem:[%s1 + $0x48] sm:$0xff]
    %v64 = vld [vmem:[%s1 + $0x50] sm:$0xff]
    %v65 = vld [vmem:[%s1 + $0x58] sm:$0xff]
    %v66 = vld [vmem:[%s1 + $0x60] sm:$0xff]
    %v67 = vld [vmem:[%s1 + $0x68] sm:$0xff]
    %v68 = vld [vmem:[%s1 + $0x70] sm:$0xff]
    %v69 = vld [vmem:[%s1 + $0x78] sm:$0xff]
    %v70 = vld [vmem:[%s3] sm:$0xf]
    %vm71 = vcmask 31744
    %v73 = vsel %vm71, %v54, 0
    %v76 = vsel %vm71, %v55, 0
    %v79 = vsel %vm71, %v56, 0
    %v82 = vsel %vm71, %v57, 0
    %v85 = vsel %vm71, %v58, 0
    %v88 = vsel %vm71, %v59, 0
    %v91 = vsel %vm71, %v60, 0
    %v94 = vsel %vm71, %v61, 0
    %v97 = vsel %vm71, %v62, 0
    %v100 = vsel %vm71, %v63, 0
    %v103 = vsel %vm71, %v64, 0
    %v106 = vsel %vm71, %v65, 0
    %v109 = vsel %vm71, %v66, 0
    %v112 = vsel %vm71, %v67, 0
    %v115 = vsel %vm71, %v68, 0
    %v118 = vsel %vm71, %v69, 0
    %vm120 = vcmask 1043456
    %v122 = vsel %vm120, %v70, 0
    %124 = vmatprep.subr.mxu0 0.0
    %125 = vmatpush1.msra.mxu0 0.0
    %126 = vmatprep.subr.mxu0 0.0
    %127 = vmatpush1.msra.mxu0 0.0
    %128 = vmatprep.subr.mxu0 0.0
    %129 = vmatpush1.msra.mxu0 0.0
    %130 = vmatprep.subr.mxu0 0.0
    %131 = vmatpush1.msra.mxu0 0.0
    %132 = vmatprep.subr.mxu0 0.0
    %133 = vmatpush1.msra.mxu0 0.0
    %134 = vmatprep.subr.mxu0 0.0
    %135 = vmatpush1.msra.mxu0 0.0
    %136 = vmatprep.subr.mxu0 0.0
    %137 = vmatpush1.msra.mxu0 0.0
    %138 = vmatprep.subr.mxu0 0.0
    %139 = vmatpush1.msra.mxu0 0.0
    %140 = vmatprep.subr.mxu0 0.0
    %141 = vmatpush1.msra.mxu0 0.0
    %142 = vmatprep.subr.mxu0 0.0
    %143 = vmatpush1.msra.mxu0 0.0
    %144 = vmatprep.subr.mxu0 0.0
    %145 = vmatpush1.msra.mxu0 0.0
    %146 = vmatprep.subr.mxu0 0.0
    %147 = vmatpush1.msra.mxu0 0.0
    %148 = vmatprep.subr.mxu0 0.0
    %149 = vmatpush1.msra.mxu0 0.0
    %150 = vmatprep.subr.mxu0 0.0
    %151 = vmatpush1.msra.mxu0 0.0
    %152 = vmatprep.subr.mxu0 0.0
    %153 = vmatpush1.msra.mxu0 0.0
    %154 = vmatprep.subr.mxu0 0.0
    %155 = vmatpush1.msra.mxu0 %v122
    %156 = vmatprep.subr.mxu0 0.0
    %157 = vmatpush2.msra.mxu0 0.0
    %158 = vmatprep.subr.mxu0 0.0
    %159 = vmatpush2.msra.mxu0 0.0
    %160 = vmatprep.subr.mxu0 0.0
    %161 = vmatpush2.msra.mxu0 0.0
    %162 = vmatprep.subr.mxu0 0.0
    %163 = vmatpush2.msra.mxu0 0.0
    %164 = vmatprep.subr.mxu0 0.0
    %165 = vmatpush2.msra.mxu0 0.0
    %166 = vmatprep.subr.mxu0 0.0
    %167 = vmatpush2.msra.mxu0 0.0
    %168 = vmatprep.subr.mxu0 0.0
    %169 = vmatpush2.msra.mxu0 0.0
    %170 = vmatprep.subr.mxu0 0.0
    %171 = vmatpush2.msra.mxu0 0.0
    %172 = vmatprep.subr.mxu0 0.0
    %173 = vmatpush2.msra.mxu0 0.0
    %174 = vmatprep.subr.mxu0 0.0
    %175 = vmatpush2.msra.mxu0 0.0
    %176 = vmatprep.subr.mxu0 0.0
    %177 = vmatpush2.msra.mxu0 0.0
    %178 = vmatprep.subr.mxu0 0.0
    %179 = vmatpush2.msra.mxu0 0.0
    %180 = vmatprep.subr.mxu0 0.0
    %181 = vmatpush2.msra.mxu0 0.0
    %182 = vmatprep.subr.mxu0 0.0
    %183 = vmatpush2.msra.mxu0 0.0
    %184 = vmatprep.subr.mxu0 0.0
    %185 = vmatpush2.msra.mxu0 0.0
    %186 = vmatprep.subr.mxu0 0.0
    %187 = vmatpush2.msra.mxu0 0.0
    %188 = vmatprep.mubr.f32.mxu0 0.0
    %189 = vmatmul.mubr.f32.gmra.mxu0 %v73
    %v190 = vpop.f32.mrf.mxu0
    %v191 = vadd.f32 0.0, %v190
    %v192 = vpop.f32.mrf.mxu0
    %193 = vmatprep.mubr.f32.mxu0 0.0
    %194 = vmatmul.mubr.f32.gmra.mxu0 %v76
    %v195 = vpop.f32.mrf.mxu0
    %v196 = vadd.f32 0.0, %v195
    %v197 = vpop.f32.mrf.mxu0
    %198 = vmatprep.mubr.f32.mxu0 0.0
    %199 = vmatmul.mubr.f32.gmra.mxu0 %v79
    %v200 = vpop.f32.mrf.mxu0
    %v201 = vadd.f32 0.0, %v200
    %v202 = vpop.f32.mrf.mxu0
    %203 = vmatprep.mubr.f32.mxu0 0.0
    %204 = vmatmul.mubr.f32.gmra.mxu0 %v82
    %v205 = vpop.f32.mrf.mxu0
    %v206 = vadd.f32 0.0, %v205
    %v207 = vpop.f32.mrf.mxu0
    %208 = vmatprep.mubr.f32.mxu0 0.0
    %209 = vmatmul.mubr.f32.gmra.mxu0 %v85
    %v210 = vpop.f32.mrf.mxu0
    %v211 = vadd.f32 0.0, %v210
    %v212 = vpop.f32.mrf.mxu0
    %213 = vmatprep.mubr.f32.mxu0 0.0
    %214 = vmatmul.mubr.f32.gmra.mxu0 %v88
    %v215 = vpop.f32.mrf.mxu0
    %v216 = vadd.f32 0.0, %v215
    %v217 = vpop.f32.mrf.mxu0
    %218 = vmatprep.mubr.f32.mxu0 0.0
    %219 = vmatmul.mubr.f32.gmra.mxu0 %v91
    %v220 = vpop.f32.mrf.mxu0
    %v221 = vadd.f32 0.0, %v220
    %v222 = vpop.f32.mrf.mxu0
    %223 = vmatprep.mubr.f32.mxu0 0.0
    %224 = vmatmul.mubr.f32.gmra.mxu0 %v94
    %v225 = vpop.f32.mrf.mxu0
    %v226 = vadd.f32 0.0, %v225
    %v227 = vpop.f32.mrf.mxu0
    %228 = vmatprep.mubr.f32.mxu0 0.0
    %229 = vmatmul.mubr.f32.gmra.mxu0 %v97
    %v230 = vpop.f32.mrf.mxu0
    %v231 = vadd.f32 0.0, %v230
    %v232 = vpop.f32.mrf.mxu0
    %233 = vmatprep.mubr.f32.mxu0 0.0
    %234 = vmatmul.mubr.f32.gmra.mxu0 %v100
    %v235 = vpop.f32.mrf.mxu0
    %v236 = vadd.f32 0.0, %v235
    %v237 = vpop.f32.mrf.mxu0
    %238 = vmatprep.mubr.f32.mxu0 0.0
    %239 = vmatmul.mubr.f32.gmra.mxu0 %v103
    %v240 = vpop.f32.mrf.mxu0
    %v241 = vadd.f32 0.0, %v240
    %v242 = vpop.f32.mrf.mxu0
    %243 = vmatprep.mubr.f32.mxu0 0.0
    %244 = vmatmul.mubr.f32.gmra.mxu0 %v106
    %v245 = vpop.f32.mrf.mxu0
    %v246 = vadd.f32 0.0, %v245
    %v247 = vpop.f32.mrf.mxu0
    %248 = vmatprep.mubr.f32.mxu0 0.0
    %249 = vmatmul.mubr.f32.gmra.mxu0 %v109
    %v250 = vpop.f32.mrf.mxu0
    %v251 = vadd.f32 0.0, %v250
    %v252 = vpop.f32.mrf.mxu0
    %253 = vmatprep.mubr.f32.mxu0 0.0
    %254 = vmatmul.mubr.f32.gmra.mxu0 %v112
    %v255 = vpop.f32.mrf.mxu0
    %v256 = vadd.f32 0.0, %v255
    %v257 = vpop.f32.mrf.mxu0
    %258 = vmatprep.mubr.f32.mxu0 0.0
    %259 = vmatmul.mubr.f32.gmra.mxu0 %v115
    %v260 = vpop.f32.mrf.mxu0
    %v261 = vadd.f32 0.0, %v260
    %v262 = vpop.f32.mrf.mxu0
    %263 = vmatprep.mubr.f32.mxu0 0.0
    %264 = vmatmul.mubr.f32.gmra.mxu0 %v118
    %v265 = vpop.f32.mrf.mxu0
    %v266 = vadd.f32 0.0, %v265
    %v267 = vpop.f32.mrf.mxu0
    %268 = vdwg.mxu0
    %vm269 = vcmask 162816
    %v271 = vsel %vm269, %v35, 0
    %v274 = vsel %vm269, %v36, 0
    %v277 = vsel %vm269, %v37, 0
    %v280 = vsel %vm269, %v38, 0
    %v283 = vsel %vm269, %v39, 0
    %v286 = vsel %vm269, %v40, 0
    %v289 = vsel %vm269, %v41, 0
    %v292 = vsel %vm269, %v42, 0
    %v295 = vsel %vm269, %v43, 0
    %v298 = vsel %vm269, %v44, 0
    %v301 = vsel %vm269, %v45, 0
    %v304 = vsel %vm269, %v46, 0
    %v307 = vsel %vm269, %v47, 0
    %v310 = vsel %vm269, %v48, 0
    %v313 = vsel %vm269, %v49, 0
    %v316 = vsel %vm269, %v50, 0
    %v319 = vsel %vm120, %v53, 0
    %321 = vmatprep.subr.mxu0 0.0
    %322 = vmatpush1.msra.mxu0 0.0
    %323 = vmatprep.subr.mxu0 0.0
    %324 = vmatpush1.msra.mxu0 0.0
    %325 = vmatprep.subr.mxu0 0.0
    %326 = vmatpush1.msra.mxu0 0.0
    %327 = vmatprep.subr.mxu0 0.0
    %328 = vmatpush1.msra.mxu0 0.0
    %329 = vmatprep.subr.mxu0 0.0
    %330 = vmatpush1.msra.mxu0 0.0
    %331 = vmatprep.subr.mxu0 0.0
    %332 = vmatpush1.msra.mxu0 0.0
    %333 = vmatprep.subr.mxu0 0.0
    %334 = vmatpush1.msra.mxu0 0.0
    %335 = vmatprep.subr.mxu0 0.0
    %336 = vmatpush1.msra.mxu0 0.0
    %337 = vmatprep.subr.mxu0 0.0
    %338 = vmatpush1.msra.mxu0 0.0
    %339 = vmatprep.subr.mxu0 0.0
    %340 = vmatpush1.msra.mxu0 0.0
    %341 = vmatprep.subr.mxu0 0.0
    %342 = vmatpush1.msra.mxu0 0.0
    %343 = vmatprep.subr.mxu0 0.0
    %344 = vmatpush1.msra.mxu0 0.0
    %345 = vmatprep.subr.mxu0 0.0
    %346 = vmatpush1.msra.mxu0 0.0
    %347 = vmatprep.subr.mxu0 0.0
    %348 = vmatpush1.msra.mxu0 %v319
    %349 = vmatprep.subr.mxu0 0.0
    %350 = vmatpush1.msra.mxu0 %v52
    %351 = vmatprep.subr.mxu0 0.0
    %352 = vmatpush1.msra.mxu0 %v51
    %353 = vmatprep.subr.mxu0 0.0
    %354 = vmatpush2.msra.mxu0 0.0
    %355 = vmatprep.subr.mxu0 0.0
    %356 = vmatpush2.msra.mxu0 0.0
    %357 = vmatprep.subr.mxu0 0.0
    %358 = vmatpush2.msra.mxu0 0.0
    %359 = vmatprep.subr.mxu0 0.0
    %360 = vmatpush2.msra.mxu0 0.0
    %361 = vmatprep.subr.mxu0 0.0
    %362 = vmatpush2.msra.mxu0 0.0
    %363 = vmatprep.subr.mxu0 0.0
    %364 = vmatpush2.msra.mxu0 0.0
    %365 = vmatprep.subr.mxu0 0.0
    %366 = vmatpush2.msra.mxu0 0.0
    %367 = vmatprep.subr.mxu0 0.0
    %368 = vmatpush2.msra.mxu0 0.0
    %369 = vmatprep.subr.mxu0 0.0
    %370 = vmatpush2.msra.mxu0 0.0
    %371 = vmatprep.subr.mxu0 0.0
    %372 = vmatpush2.msra.mxu0 0.0
    %373 = vmatprep.subr.mxu0 0.0
    %374 = vmatpush2.msra.mxu0 0.0
    %375 = vmatprep.subr.mxu0 0.0
    %376 = vmatpush2.msra.mxu0 0.0
    %377 = vmatprep.subr.mxu0 0.0
    %378 = vmatpush2.msra.mxu0 0.0
    %379 = vmatprep.subr.mxu0 0.0
    %380 = vmatpush2.msra.mxu0 0.0
    %381 = vmatprep.subr.mxu0 0.0
    %382 = vmatpush2.msra.mxu0 0.0
    %383 = vmatprep.subr.mxu0 0.0
    %384 = vmatpush2.msra.mxu0 0.0
    %385 = vmatprep.mubr.f32.mxu0 0.0
    %386 = vmatmul.mubr.f32.gmra.mxu0 %v271
    %v387 = vpop.f32.mrf.mxu0
    %v388 = vadd.f32 %v191, %v387
    %v389 = vpop.f32.mrf.mxu0
    %390 = vmatprep.mubr.f32.mxu0 0.0
    %391 = vmatmul.mubr.f32.gmra.mxu0 %v274
    %v392 = vpop.f32.mrf.mxu0
    %v393 = vadd.f32 %v196, %v392
    %v394 = vpop.f32.mrf.mxu0
    %395 = vmatprep.mubr.f32.mxu0 0.0
    %396 = vmatmul.mubr.f32.gmra.mxu0 %v277
    %v397 = vpop.f32.mrf.mxu0
    %v398 = vadd.f32 %v201, %v397
    %v399 = vpop.f32.mrf.mxu0
    %400 = vmatprep.mubr.f32.mxu0 0.0
    %401 = vmatmul.mubr.f32.gmra.mxu0 %v280
    %v402 = vpop.f32.mrf.mxu0
    %v403 = vadd.f32 %v206, %v402
    %v404 = vpop.f32.mrf.mxu0
    %405 = vmatprep.mubr.f32.mxu0 0.0
    %406 = vmatmul.mubr.f32.gmra.mxu0 %v283
    %v407 = vpop.f32.mrf.mxu0
    %v408 = vadd.f32 %v211, %v407
    %v409 = vpop.f32.mrf.mxu0
    %410 = vmatprep.mubr.f32.mxu0 0.0
    %411 = vmatmul.mubr.f32.gmra.mxu0 %v286
    %v412 = vpop.f32.mrf.mxu0
    %v413 = vadd.f32 %v216, %v412
    %v414 = vpop.f32.mrf.mxu0
    %415 = vmatprep.mubr.f32.mxu0 0.0
    %416 = vmatmul.mubr.f32.gmra.mxu0 %v289
    %v417 = vpop.f32.mrf.mxu0
    %v418 = vadd.f32 %v221, %v417
    %v419 = vpop.f32.mrf.mxu0
    %420 = vmatprep.mubr.f32.mxu0 0.0
    %421 = vmatmul.mubr.f32.gmra.mxu0 %v292
    %v422 = vpop.f32.mrf.mxu0
    %v423 = vadd.f32 %v226, %v422
    %v424 = vpop.f32.mrf.mxu0
    %425 = vmatprep.mubr.f32.mxu0 0.0
    %426 = vmatmul.mubr.f32.gmra.mxu0 %v295
    %v427 = vpop.f32.mrf.mxu0
    %v428 = vadd.f32 %v231, %v427
    %v429 = vpop.f32.mrf.mxu0
    %430 = vmatprep.mubr.f32.mxu0 0.0
    %431 = vmatmul.mubr.f32.gmra.mxu0 %v298
    %v432 = vpop.f32.mrf.mxu0
    %v433 = vadd.f32 %v236, %v432
    %v434 = vpop.f32.mrf.mxu0
    %435 = vmatprep.mubr.f32.mxu0 0.0
    %436 = vmatmul.mubr.f32.gmra.mxu0 %v301
    %v437 = vpop.f32.mrf.mxu0
    %v438 = vadd.f32 %v241, %v437
    %v439 = vpop.f32.mrf.mxu0
    %440 = vmatprep.mubr.f32.mxu0 0.0
    %441 = vmatmul.mubr.f32.gmra.mxu0 %v304
    %v442 = vpop.f32.mrf.mxu0
    %v443 = vadd.f32 %v246, %v442
    %v444 = vpop.f32.mrf.mxu0
    %445 = vmatprep.mubr.f32.mxu0 0.0
    %446 = vmatmul.mubr.f32.gmra.mxu0 %v307
    %v447 = vpop.f32.mrf.mxu0
    %v448 = vadd.f32 %v251, %v447
    %v449 = vpop.f32.mrf.mxu0
    %450 = vmatprep.mubr.f32.mxu0 0.0
    %451 = vmatmul.mubr.f32.gmra.mxu0 %v310
    %v452 = vpop.f32.mrf.mxu0
    %v453 = vadd.f32 %v256, %v452
    %v454 = vpop.f32.mrf.mxu0
    %455 = vmatprep.mubr.f32.mxu0 0.0
    %456 = vmatmul.mubr.f32.gmra.mxu0 %v313
    %v457 = vpop.f32.mrf.mxu0
    %v458 = vadd.f32 %v261, %v457
    %v459 = vpop.f32.mrf.mxu0
    %460 = vmatprep.mubr.f32.mxu0 0.0
    %461 = vmatmul.mubr.f32.gmra.mxu0 %v316
    %v462 = vpop.f32.mrf.mxu0
    %v463 = vadd.f32 %v266, %v462
    %v464 = vpop.f32.mrf.mxu0
    %465 = vdwg.mxu0
    %v466 = vld [vmem:[%s4] sm:$0x1]
    %v468 = vlaneseq
    %v469 = vshrl.u32 %v468, 7
    %v470 = vsub.s32 0, %v469
    %v471 = vrot.slane %v466, %v470
    %v473 = vadd.f32 %v388, %v471
    %v474 = vadd.f32 %v393, %v471
    %v475 = vadd.f32 %v398, %v471
    %v476 = vadd.f32 %v403, %v471
    %v477 = vadd.f32 %v408, %v471
    %v478 = vadd.f32 %v413, %v471
    %v479 = vadd.f32 %v418, %v471
    %v480 = vadd.f32 %v423, %v471
    %v481 = vadd.f32 %v428, %v471
    %v482 = vadd.f32 %v433, %v471
    %v483 = vadd.f32 %v438, %v471
    %v484 = vadd.f32 %v443, %v471
    %v485 = vadd.f32 %v448, %v471
    %v486 = vadd.f32 %v453, %v471
    %v487 = vadd.f32 %v458, %v471
    %v488 = vadd.f32 %v463, %v471
    %v489 = vmax.f32 %v473, 0.0
    %v490 = vmax.f32 %v474, 0.0
    %v491 = vmax.f32 %v475, 0.0
    %v492 = vmax.f32 %v476, 0.0
    %v493 = vmax.f32 %v477, 0.0
    %v494 = vmax.f32 %v478, 0.0
    %v495 = vmax.f32 %v479, 0.0
    %v496 = vmax.f32 %v480, 0.0
    %v497 = vmax.f32 %v481, 0.0
    %v498 = vmax.f32 %v482, 0.0
    %v499 = vmax.f32 %v483, 0.0
    %v500 = vmax.f32 %v484, 0.0
    %v501 = vmax.f32 %v485, 0.0
    %v502 = vmax.f32 %v486, 0.0
    %v503 = vmax.f32 %v487, 0.0
    %v504 = vmax.f32 %v488, 0.0
    %v505 = vld [vmem:[%s5] sm:$0xff]
    %v506 = vld [vmem:[%s5 + $0x8] sm:$0xff]
    %v507 = vld [vmem:[%s5 + $0x10] sm:$0xff]
    %v508 = vld [vmem:[%s5 + $0x18] sm:$0xff]
    %v509 = vld [vmem:[%s5 + $0x20] sm:$0xff]
    %v510 = vld [vmem:[%s5 + $0x28] sm:$0xff]
    %v511 = vld [vmem:[%s5 + $0x30] sm:$0xff]
    %v512 = vld [vmem:[%s5 + $0x38] sm:$0xff]
    %v513 = vld [vmem:[%s5 + $0x40] sm:$0xff]
    %v514 = vld [vmem:[%s5 + $0x48] sm:$0xff]
    %v515 = vld [vmem:[%s5 + $0x50] sm:$0xff]
    %v516 = vld [vmem:[%s5 + $0x58] sm:$0xff]
    %v517 = vld [vmem:[%s5 + $0x60] sm:$0xff]
    %v518 = vld [vmem:[%s5 + $0x68] sm:$0xff]
    %v519 = vld [vmem:[%s5 + $0x70] sm:$0xff]
    %v520 = vld [vmem:[%s5 + $0x78] sm:$0xff]
    %v521 = vld [vmem:[%s6] sm:$0x1]
    %v523 = vlaneseq
    %v524 = vshrl.u32 %v523, 7
    %v525 = vsub.s32 0, %v524
    %v526 = vrot.slane %v521, %v525
    %528 = vmatprep.subr.mxu0 0.0
    %529 = vmatpush1.msra.mxu0 %v520
    %530 = vmatprep.subr.mxu0 0.0
    %531 = vmatpush1.msra.mxu0 %v519
    %532 = vmatprep.subr.mxu0 0.0
    %533 = vmatpush1.msra.mxu0 %v518
    %534 = vmatprep.subr.mxu0 0.0
    %535 = vmatpush1.msra.mxu0 %v517
    %536 = vmatprep.subr.mxu0 0.0
    %537 = vmatpush1.msra.mxu0 %v516
    %538 = vmatprep.subr.mxu0 0.0
    %539 = vmatpush1.msra.mxu0 %v515
    %540 = vmatprep.subr.mxu0 0.0
    %541 = vmatpush1.msra.mxu0 %v514
    %542 = vmatprep.subr.mxu0 0.0
    %543 = vmatpush1.msra.mxu0 %v513
    %544 = vmatprep.subr.mxu0 0.0
    %545 = vmatpush1.msra.mxu0 %v512
    %546 = vmatprep.subr.mxu0 0.0
    %547 = vmatpush1.msra.mxu0 %v511
    %548 = vmatprep.subr.mxu0 0.0
    %549 = vmatpush1.msra.mxu0 %v510
    %550 = vmatprep.subr.mxu0 0.0
    %551 = vmatpush1.msra.mxu0 %v509
    %552 = vmatprep.subr.mxu0 0.0
    %553 = vmatpush1.msra.mxu0 %v508
    %554 = vmatprep.subr.mxu0 0.0
    %555 = vmatpush1.msra.mxu0 %v507
    %556 = vmatprep.subr.mxu0 0.0
    %557 = vmatpush1.msra.mxu0 %v506
    %558 = vmatprep.subr.mxu0 0.0
    %559 = vmatpush1.msra.mxu0 %v505
    %560 = vmatprep.subr.mxu0 0.0
    %561 = vmatpush2.msra.mxu0 0.0
    %562 = vmatprep.subr.mxu0 0.0
    %563 = vmatpush2.msra.mxu0 0.0
    %564 = vmatprep.subr.mxu0 0.0
    %565 = vmatpush2.msra.mxu0 0.0
    %566 = vmatprep.subr.mxu0 0.0
    %567 = vmatpush2.msra.mxu0 0.0
    %568 = vmatprep.subr.mxu0 0.0
    %569 = vmatpush2.msra.mxu0 0.0
    %570 = vmatprep.subr.mxu0 0.0
    %571 = vmatpush2.msra.mxu0 0.0
    %572 = vmatprep.subr.mxu0 0.0
    %573 = vmatpush2.msra.mxu0 0.0
    %574 = vmatprep.subr.mxu0 0.0
    %575 = vmatpush2.msra.mxu0 0.0
    %576 = vmatprep.subr.mxu0 0.0
    %577 = vmatpush2.msra.mxu0 0.0
    %578 = vmatprep.subr.mxu0 0.0
    %579 = vmatpush2.msra.mxu0 0.0
    %580 = vmatprep.subr.mxu0 0.0
    %581 = vmatpush2.msra.mxu0 0.0
    %582 = vmatprep.subr.mxu0 0.0
    %583 = vmatpush2.msra.mxu0 0.0
    %584 = vmatprep.subr.mxu0 0.0
    %585 = vmatpush2.msra.mxu0 0.0
    %586 = vmatprep.subr.mxu0 0.0
    %587 = vmatpush2.msra.mxu0 0.0
    %588 = vmatprep.subr.mxu0 0.0
    %589 = vmatpush2.msra.mxu0 0.0
    %590 = vmatprep.subr.mxu0 0.0
    %591 = vmatpush2.msra.mxu0 0.0
    %592 = vmatprep.mubr.f32.mxu0 0.0
    %593 = vmatmul.mubr.f32.gmra.mxu0 %v489
    %v594 = vpop.f32.mrf.mxu0
    %v595 = vadd.f32 %v526, %v594
    %v596 = vpop.f32.mrf.mxu0
    %597 = vmatprep.mubr.f32.mxu0 0.0
    %598 = vmatmul.mubr.f32.gmra.mxu0 %v490
    %v599 = vpop.f32.mrf.mxu0
    %v600 = vadd.f32 %v526, %v599
    %v601 = vpop.f32.mrf.mxu0
    %602 = vmatprep.mubr.f32.mxu0 0.0
    %603 = vmatmul.mubr.f32.gmra.mxu0 %v491
    %v604 = vpop.f32.mrf.mxu0
    %v605 = vadd.f32 %v526, %v604
    %v606 = vpop.f32.mrf.mxu0
    %607 = vmatprep.mubr.f32.mxu0 0.0
    %608 = vmatmul.mubr.f32.gmra.mxu0 %v492
    %v609 = vpop.f32.mrf.mxu0
    %v610 = vadd.f32 %v526, %v609
    %v611 = vpop.f32.mrf.mxu0
    %612 = vmatprep.mubr.f32.mxu0 0.0
    %613 = vmatmul.mubr.f32.gmra.mxu0 %v493
    %v614 = vpop.f32.mrf.mxu0
    %v615 = vadd.f32 %v526, %v614
    %v616 = vpop.f32.mrf.mxu0
    %617 = vmatprep.mubr.f32.mxu0 0.0
    %618 = vmatmul.mubr.f32.gmra.mxu0 %v494
    %v619 = vpop.f32.mrf.mxu0
    %v620 = vadd.f32 %v526, %v619
    %v621 = vpop.f32.mrf.mxu0
    %622 = vmatprep.mubr.f32.mxu0 0.0
    %623 = vmatmul.mubr.f32.gmra.mxu0 %v495
    %v624 = vpop.f32.mrf.mxu0
    %v625 = vadd.f32 %v526, %v624
    %v626 = vpop.f32.mrf.mxu0
    %627 = vmatprep.mubr.f32.mxu0 0.0
    %628 = vmatmul.mubr.f32.gmra.mxu0 %v496
    %v629 = vpop.f32.mrf.mxu0
    %v630 = vadd.f32 %v526, %v629
    %v631 = vpop.f32.mrf.mxu0
    %632 = vmatprep.mubr.f32.mxu0 0.0
    %633 = vmatmul.mubr.f32.gmra.mxu0 %v497
    %v634 = vpop.f32.mrf.mxu0
    %v635 = vadd.f32 %v526, %v634
    %v636 = vpop.f32.mrf.mxu0
    %637 = vmatprep.mubr.f32.mxu0 0.0
    %638 = vmatmul.mubr.f32.gmra.mxu0 %v498
    %v639 = vpop.f32.mrf.mxu0
    %v640 = vadd.f32 %v526, %v639
    %v641 = vpop.f32.mrf.mxu0
    %642 = vmatprep.mubr.f32.mxu0 0.0
    %643 = vmatmul.mubr.f32.gmra.mxu0 %v499
    %v644 = vpop.f32.mrf.mxu0
    %v645 = vadd.f32 %v526, %v644
    %v646 = vpop.f32.mrf.mxu0
    %647 = vmatprep.mubr.f32.mxu0 0.0
    %648 = vmatmul.mubr.f32.gmra.mxu0 %v500
    %v649 = vpop.f32.mrf.mxu0
    %v650 = vadd.f32 %v526, %v649
    %v651 = vpop.f32.mrf.mxu0
    %652 = vmatprep.mubr.f32.mxu0 0.0
    %653 = vmatmul.mubr.f32.gmra.mxu0 %v501
    %v654 = vpop.f32.mrf.mxu0
    %v655 = vadd.f32 %v526, %v654
    %v656 = vpop.f32.mrf.mxu0
    %657 = vmatprep.mubr.f32.mxu0 0.0
    %658 = vmatmul.mubr.f32.gmra.mxu0 %v502
    %v659 = vpop.f32.mrf.mxu0
    %v660 = vadd.f32 %v526, %v659
    %v661 = vpop.f32.mrf.mxu0
    %662 = vmatprep.mubr.f32.mxu0 0.0
    %663 = vmatmul.mubr.f32.gmra.mxu0 %v503
    %v664 = vpop.f32.mrf.mxu0
    %v665 = vadd.f32 %v526, %v664
    %v666 = vpop.f32.mrf.mxu0
    %667 = vmatprep.mubr.f32.mxu0 0.0
    %668 = vmatmul.mubr.f32.gmra.mxu0 %v504
    %v669 = vpop.f32.mrf.mxu0
    %v670 = vadd.f32 %v526, %v669
    %v671 = vpop.f32.mrf.mxu0
    %672 = vdwg.mxu0
    %v673 = vmax.f32 %v595, 0.0
    %v674 = vmax.f32 %v600, 0.0
    %v675 = vmax.f32 %v605, 0.0
    %v676 = vmax.f32 %v610, 0.0
    %v677 = vmax.f32 %v615, 0.0
    %v678 = vmax.f32 %v620, 0.0
    %v679 = vmax.f32 %v625, 0.0
    %v680 = vmax.f32 %v630, 0.0
    %v681 = vmax.f32 %v635, 0.0
    %v682 = vmax.f32 %v640, 0.0
    %v683 = vmax.f32 %v645, 0.0
    %v684 = vmax.f32 %v650, 0.0
    %v685 = vmax.f32 %v655, 0.0
    %v686 = vmax.f32 %v660, 0.0
    %v687 = vmax.f32 %v665, 0.0
    %v688 = vmax.f32 %v670, 0.0
    %v689 = vld [vmem:[%s7] sm:$0x1]
    %v690 = vld [vmem:[#allocation2] sm:$0x1]
    %692 = vset.pattern.permute.xlu0 0
    %693 = vperm.xlu0 %692, %v690
    %v694 = vpop.permute.xlu0 %693
    %v696 = vlaneseq
    %v697 = vshrl.u32 %v696, 7
    %v698 = vsub.s32 0, %v697
    %v699 = vrot.slane %v694, %v698
    %vm700 = vcmask 523264
    %v702 = vsel %vm700, %v689, 0
    %v705 = vsel %vm700, %v673, 0
    %v708 = vsel %vm700, %v674, 0
    %v711 = vsel %vm700, %v675, 0
    %v714 = vsel %vm700, %v676, 0
    %v717 = vsel %vm700, %v677, 0
    %v720 = vsel %vm700, %v678, 0
    %v723 = vsel %vm700, %v679, 0
    %v726 = vsel %vm700, %v680, 0
    %v729 = vsel %vm700, %v681, 0
    %v732 = vsel %vm700, %v682, 0
    %v735 = vsel %vm700, %v683, 0
    %v738 = vsel %vm700, %v684, 0
    %v741 = vsel %vm700, %v685, 0
    %v744 = vsel %vm700, %v686, 0
    %v747 = vsel %vm700, %v687, 0
    %v750 = vsel %vm700, %v688, 0
    %752 = vmatprep.subr.mxu0 0.0
    %753 = vmatpush1.xpose.msra.mxu0 %v750
    %754 = vmatprep.subr.mxu0 0.0
    %755 = vmatpush1.xpose.msra.mxu0 %v747
    %756 = vmatprep.subr.mxu0 0.0
    %757 = vmatpush1.xpose.msra.mxu0 %v744
    %758 = vmatprep.subr.mxu0 0.0
    %759 = vmatpush1.xpose.msra.mxu0 %v741
    %760 = vmatprep.subr.mxu0 0.0
    %761 = vmatpush1.xpose.msra.mxu0 %v738
    %762 = vmatprep.subr.mxu0 0.0
    %763 = vmatpush1.xpose.msra.mxu0 %v735
    %764 = vmatprep.subr.mxu0 0.0
    %765 = vmatpush1.xpose.msra.mxu0 %v732
    %766 = vmatprep.subr.mxu0 0.0
    %767 = vmatpush1.xpose.msra.mxu0 %v729
    %768 = vmatprep.subr.mxu0 0.0
    %769 = vmatpush1.xpose.msra.mxu0 %v726
    %770 = vmatprep.subr.mxu0 0.0
    %771 = vmatpush1.xpose.msra.mxu0 %v723
    %772 = vmatprep.subr.mxu0 0.0
    %773 = vmatpush1.xpose.msra.mxu0 %v720
    %774 = vmatprep.subr.mxu0 0.0
    %775 = vmatpush1.xpose.msra.mxu0 %v717
    %776 = vmatprep.subr.mxu0 0.0
    %777 = vmatpush1.xpose.msra.mxu0 %v714
    %778 = vmatprep.subr.mxu0 0.0
    %779 = vmatpush1.xpose.msra.mxu0 %v711
    %780 = vmatprep.subr.mxu0 0.0
    %781 = vmatpush1.xpose.msra.mxu0 %v708
    %782 = vmatprep.subr.mxu0 0.0
    %783 = vmatpush1.xpose.msra.mxu0 %v705
    %784 = vmatprep.subr.mxu0 0.0
    %785 = vmatpush2.xpose.msra.mxu0 0.0
    %786 = vmatprep.subr.mxu0 0.0
    %787 = vmatpush2.xpose.msra.mxu0 0.0
    %788 = vmatprep.subr.mxu0 0.0
    %789 = vmatpush2.xpose.msra.mxu0 0.0
    %790 = vmatprep.subr.mxu0 0.0
    %791 = vmatpush2.xpose.msra.mxu0 0.0
    %792 = vmatprep.subr.mxu0 0.0
    %793 = vmatpush2.xpose.msra.mxu0 0.0
    %794 = vmatprep.subr.mxu0 0.0
    %795 = vmatpush2.xpose.msra.mxu0 0.0
    %796 = vmatprep.subr.mxu0 0.0
    %797 = vmatpush2.xpose.msra.mxu0 0.0
    %798 = vmatprep.subr.mxu0 0.0
    %799 = vmatpush2.xpose.msra.mxu0 0.0
    %800 = vmatprep.subr.mxu0 0.0
    %801 = vmatpush2.xpose.msra.mxu0 0.0
    %802 = vmatprep.subr.mxu0 0.0
    %803 = vmatpush2.xpose.msra.mxu0 0.0
    %804 = vmatprep.subr.mxu0 0.0
    %805 = vmatpush2.xpose.msra.mxu0 0.0
    %806 = vmatprep.subr.mxu0 0.0
    %807 = vmatpush2.xpose.msra.mxu0 0.0
    %808 = vmatprep.subr.mxu0 0.0
    %809 = vmatpush2.xpose.msra.mxu0 0.0
    %810 = vmatprep.subr.mxu0 0.0
    %811 = vmatpush2.xpose.msra.mxu0 0.0
    %812 = vmatprep.subr.mxu0 0.0
    %813 = vmatpush2.xpose.msra.mxu0 0.0
    %814 = vmatprep.subr.mxu0 0.0
    %815 = vmatpush2.xpose.msra.mxu0 0.0
    %816 = vmatprep.mubr.f32.mxu0 0.0
    %817 = vmatmul.mubr.f32.gmra.mxu0 %v702
    %v818 = vpop.f32.mrf.mxu0
    %v819 = vadd.f32 %v699, %v818
    %v820 = vpop.f32.mrf.mxu0
    %821 = vdwg.mxu0
    %v822 = vxor.u32 %v819, 2147483648
    %v823 = vmul.f32 %v822, 1.442695
    %v824 = vpow.pop %v823
    %v825 = vadd.f32 %v824, 1.0
    %v826 = vrcp.pop %v825
    %v827 = vmul.f32 1.0, %v826
    %828 = vst [vmem:[#allocation3] sm:$0x1] %v827
    // Predicated region
    $region38: #{tpu_custom_call.1} parent=1 // pred_check
      _
    $region39: #{tpu_custom_call.1} parent=1 // pred_check_branch
      %830 = sbr.rel (0) target = $region41
    $region40: #{tpu_custom_call.1} parent=1 // pred_region
      %s832 = ssub.s32 16, 16
      %833 = vsyncadd [#allocation4], %s832
      %s835 = sshll.u32 [#allocation3], 4
      %s836 = int_to_ptr.vmem [resolvable:$true] %s835
      %838 = dma.vmem_to_hbm [thread:$0]  %s836, 16, %s9, [#allocation4]
    $region41: #{tpu_custom_call.1} parent=1 // pred_fallthru
      _
    // Predicated region
    $region42: #{tpu_custom_call.1} parent=1 // pred_check
      _
    $region43: #{tpu_custom_call.1} parent=1 // pred_check_branch
      %840 = sbr.rel (0) target = $region45
    $region44: #{tpu_custom_call.1} parent=1 // pred_region
      %841 = dma.done [#allocation4], 16
    $region45: #{tpu_custom_call.1} parent=1 // pred_fallthru
      _
    %842 = vsyncpa [#allocation4], 1

</llo_original>
